<compile_context>
chip_gen: v7x
topology: tpu7x:2x2x1
jax: 0.10.0
libtpu: 0.0.40
codegen_flags: <defaults>
</compile_context>

<pallas_src>
import jax
import jax.numpy as jnp
from jax.experimental import pallas as pl
from jax.experimental.pallas import tpu as pltpu

_LANE = 128


def _combiner_kernel(clip_p_ref, bert_p_ref, clip_ref, bert_ref, out_ref):
    # clip_p_ref / bert_p_ref: (1, 1) f32 scalars in SMEM (same block every step).
    # clip_ref / bert_ref / out_ref: (block_rows, block_h) tiles in VMEM.
    cp = clip_p_ref[0, 0]
    bp = bert_p_ref[0, 0]
    # Compute in f32 (matches PyTorch promotion against f32 params); kernel is
    # DMA-bound so the converts are free filler on the VPU.
    x = clip_ref[...].astype(jnp.float32)
    y = bert_ref[...].astype(jnp.float32)
    out_ref[...] = (x * cp + y * bp).astype(out_ref.dtype)


def _round_up(x, m):
    return ((x + m - 1) // m) * m


def _vmem_capacity_bytes():
    # Prefer the trace-time query; fall back to per-generation constants rather
    # than silently halving tile sizes on v5e/v6e.
    try:
        info = pltpu.get_tpu_info()
        cap = getattr(info, "vmem_capacity_bytes", None)
        if cap:
            return int(cap)
    except Exception:
        pass
    try:
        kind = jax.devices()[0].device_kind.lower()
        if "v5" in kind or "v6" in kind:
            return 128 << 20  # v5e / v6e
    except Exception:
        pass
    return 64 << 20  # v7x (per TensorCore) / conservative default


def _choose_tiles(rows, H, itemsize, vmem_cap):
    # Sublane alignment: 8 rows (4-byte), 16 (2-byte), 32 (1-byte).
    align = max(8, 32 // max(1, itemsize))

    # VMEM budget: 3 streams (clip, bert, out) x 2 pipeline buffers = 6 live
    # blocks. Keep them under ~0.65 * capacity and below the scoped limit we set.
    budget = min(int(vmem_cap * 0.65), vmem_cap * 3 // 4 - (4 << 20))

    block_h = H
    max_rows = budget // (6 * H * itemsize)
    if max_rows < align:
        # Even `align` full-width rows don't fit: split H into lane-aligned chunks.
        max_h = budget // (6 * align * itemsize)
        block_h = min(H, max(_LANE, (max_h // _LANE) * _LANE))
        block_rows = align
    else:
        # Full-width blocks: a block is one contiguous HBM region per DMA.
        block_rows = (max_rows // align) * align
        block_rows = min(block_rows, _round_up(rows, align))

    # Megacore (v7x): guarantee >= 2 grid steps so both TensorCores get work.
    n_r = pl.cdiv(rows, block_rows)
    n_h = pl.cdiv(H, block_h)
    if n_r * n_h < 2 and rows > align:
        block_rows = _round_up(pl.cdiv(rows, 2), align)
        n_r = pl.cdiv(rows, block_rows)
    # Prefer an even total step count for balanced 2-TC sharding (cheap tweak).
    if n_r > 1 and (n_r * n_h) % 2 == 1 and rows > align:
        cand = _round_up(pl.cdiv(rows, n_r + 1), align)
        if cand >= align and (pl.cdiv(rows, cand) * n_h) % 2 == 0:
            block_rows = cand

    return block_rows, block_h


def _run_pallas_2d(clip2d, bert2d, cp, bp, itemsize, vmem_cap):
    rows, H = clip2d.shape
    block_rows, block_h = _choose_tiles(rows, H, itemsize, vmem_cap)
    block_bytes = block_rows * block_h * itemsize
    # Scoped VMEM: 6 live blocks + headroom, never above 3/4 of physical capacity.
    vmem_limit = int(min(vmem_cap * 3 // 4, 6 * block_bytes + (8 << 20)))
    vmem_limit = max(vmem_limit, 16 << 20)

    cost = pl.CostEstimate(
        flops=3 * rows * H,                      # mul + mul + add per element
        transcendentals=0,
        bytes_accessed=3 * rows * H * itemsize,  # 2 reads + 1 write
    )

    if block_h == H:
        # Common case: 1D grid over rows, full-width contiguous blocks.
        grid = (pl.cdiv(rows, block_rows),)
        smem_spec = pl.BlockSpec((1, 1), lambda i: (0, 0), memory_space=pltpu.SMEM)
        data_spec = pl.BlockSpec((block_rows, H), lambda i: (i, 0))
        dim_sem = ("parallel",)
    else:
        grid = (pl.cdiv(rows, block_rows), pl.cdiv(H, block_h))
        smem_spec = pl.BlockSpec((1, 1), lambda i, j: (0, 0), memory_space=pltpu.SMEM)
        data_spec = pl.BlockSpec((block_rows, block_h), lambda i, j: (i, j))
        dim_sem = ("parallel", "parallel")

    return pl.pallas_call(
        _combiner_kernel,
        out_shape=jax.ShapeDtypeStruct((rows, H), clip2d.dtype),
        grid_spec=pltpu.PrefetchScalarGridSpec(
            num_scalar_prefetch=0,
            grid=grid,
            in_specs=[smem_spec, smem_spec, data_spec, data_spec],
            out_specs=data_spec,
        ),
        compiler_params=pltpu.CompilerParams(
            dimension_semantics=dim_sem,
            vmem_limit_bytes=vmem_limit,
        ),
        cost_estimate=cost,
    )(cp, bp, clip2d, bert2d)


def combiner_forward(clip, bert, clip_param, bert_param, *, use_pallas=None):
    """Pallas implementation of `clip * clip_param + bert * bert_param`."""
    assert clip.shape == bert.shape and clip.dtype == bert.dtype
    orig_shape = clip.shape
    H = orig_shape[-1] if orig_shape else 1
    rows = 1
    for d in orig_shape[:-1]:
        rows *= d
    N = rows * H
    itemsize = jnp.dtype(clip.dtype).itemsize

    # Params stay f32 (PyTorch-style promotion); only the final result is cast
    # back to the activation dtype.
    cp = jnp.asarray(clip_param, dtype=jnp.float32).reshape(1, 1)
    bp = jnp.asarray(bert_param, dtype=jnp.float32).reshape(1, 1)

    def _xla(c, b):
        out = c.astype(jnp.float32) * cp[0, 0] + b.astype(jnp.float32) * bp[0, 0]
        return out.astype(c.dtype)

    # A standalone elementwise kernel can at best hit the HBM roofline; for
    # small/medium tensors XLA fusion into producers/consumers is strictly better.
    total_bytes = 3 * N * itemsize
    if use_pallas is None:
        use_pallas = total_bytes >= (4 << 20)
    if not use_pallas or N == 0:
        return _xla(clip, bert)

    vmem_cap = _vmem_capacity_bytes()

    if H % _LANE == 0 and H >= _LANE:
        out2d = _run_pallas_2d(
            clip.reshape(rows, H), bert.reshape(rows, H), cp, bp, itemsize, vmem_cap
        )
        return out2d.reshape(orig_shape)

    # H not lane-aligned: the op is elementwise, so flatten and present a
    # lane-dense slab (N/W, W) with W a multiple of 128 — keeps output stores
    # unmasked instead of masked partial stores (biggest single perf lever).
    if N % _LANE == 0:
        W = _LANE
        for cand in (4096, 2048, 1024, 512, 256):
            if N % cand == 0 and N // cand >= 8:
                W = cand
                break
        out2d = _run_pallas_2d(
            clip.reshape(N // W, W), bert.reshape(N // W, W), cp, bp, itemsize, vmem_cap
        )
        return out2d.reshape(orig_shape)

    # N not a multiple of 128: stitching a Pallas main slab with an XLA-computed
    # tail would require a concatenate (extra full-tensor HBM round trip), so the
    # fused XLA elementwise path is strictly faster here.
    return _xla(clip, bert)


if __name__ == "__main__":
    key = jax.random.PRNGKey(0)
    k1, k2, k3, k4 = jax.random.split(key, 4)

    # PyTorch initializes these parameters to zeros; use nonzero deterministic
    # values so the elementwise combine is actually exercised.
    clip_param = jnp.array([0.5], dtype=jnp.float32)
    bert_param = jnp.array([-0.25], dtype=jnp.float32)

    # Case 1: lane-aligned hidden (batch=2, seq=8, hidden=128) — (rows, H) path.
    B, S, H = 2, 8, 128
    clip = jax.random.normal(k1, (B, S, H), dtype=jnp.float32)
    bert = jax.random.normal(k2, (B, S, H), dtype=jnp.float32)
    out = combiner_forward(clip, bert, clip_param, bert_param, use_pallas=True)
    out = jax.block_until_ready(out)
    ref = clip * clip_param[0] + bert * bert_param[0]
    assert out.shape == ref.shape and out.dtype == ref.dtype
    assert jnp.allclose(out, ref, atol=1e-6, rtol=1e-6)

    # Case 2: non-lane-aligned hidden (hidden=96) — flattened lane-dense slab path.
    H2 = 96
    clip2 = jax.random.normal(k3, (B, S, H2), dtype=jnp.float32)
    bert2 = jax.random.normal(k4, (B, S, H2), dtype=jnp.float32)
    out2 = combiner_forward(clip2, bert2, clip_param, bert_param, use_pallas=True)
    out2 = jax.block_until_ready(out2)
    ref2 = clip2 * clip_param[0] + bert2 * bert_param[0]
    assert out2.shape == ref2.shape and out2.dtype == ref2.dtype
    assert jnp.allclose(out2, ref2, atol=1e-6, rtol=1e-6)

    print("KERNEL_OK")
</pallas_src>

<mosaic_0001>
module attributes {stable_mosaic.version = 11 : i64} {
  func.func @_combiner_kernel(%arg0: i32, %arg1: memref<1x1xf32, #tpu.memory_space<smem>>, %arg2: memref<1x1xf32, #tpu.memory_space<smem>>, %arg3: memref<8x128xf32, #tpu.memory_space<vmem>>, %arg4: memref<8x128xf32, #tpu.memory_space<vmem>>, %arg5: memref<8x128xf32, #tpu.memory_space<vmem>>) attributes {dimension_semantics = [#tpu.dimension_semantics<parallel>], iteration_bounds = array<i64: 2>, scalar_prefetch = 0 : i64, scratch_operands = 0 : i64, tpu.core_type = #tpu.core_type<tc>, window_params = [{transform_indices = @transform_0, window_bounds = array<i64: 1, 1>}, {transform_indices = @transform_1, window_bounds = array<i64: 1, 1>}, {transform_indices = @transform_2, window_bounds = array<i64: 8, 128>}, {transform_indices = @transform_3, window_bounds = array<i64: 8, 128>}, {transform_indices = @transform_4, window_bounds = array<i64: 8, 128>}]} {
    %c0 = arith.constant 0 : index
    %c0_0 = arith.constant 0 : index
    %0 = memref.load %arg1[%c0, %c0_0] : memref<1x1xf32, #tpu.memory_space<smem>>
    %c0_1 = arith.constant 0 : index
    %c0_2 = arith.constant 0 : index
    %1 = memref.load %arg2[%c0_1, %c0_2] : memref<1x1xf32, #tpu.memory_space<smem>>
    %c0_3 = arith.constant 0 : index
    %c0_4 = arith.constant 0 : index
    %2 = vector.load %arg3[%c0_3, %c0_4] : memref<8x128xf32, #tpu.memory_space<vmem>>, vector<8x128xf32>
    %c0_5 = arith.constant 0 : index
    %c0_6 = arith.constant 0 : index
    %3 = vector.load %arg4[%c0_5, %c0_6] : memref<8x128xf32, #tpu.memory_space<vmem>>, vector<8x128xf32>
    %4 = vector.broadcast %0 : f32 to vector<8x128xf32>
    %5 = arith.mulf %2, %4 : vector<8x128xf32>
    %6 = vector.broadcast %1 : f32 to vector<8x128xf32>
    %7 = arith.mulf %3, %6 : vector<8x128xf32>
    %8 = arith.addf %5, %7 : vector<8x128xf32>
    %c0_7 = arith.constant 0 : index
    %c0_8 = arith.constant 0 : index
    %9 = vector.load %arg5[%c0_7, %c0_8] : memref<8x128xf32, #tpu.memory_space<vmem>>, vector<8x128xf32>
    tpu.vector_store %arg5[%c0_7, %c0_8], %8 {strides = array<i32>} : memref<8x128xf32, #tpu.memory_space<vmem>>, vector<8x128xf32>,
    return
  }
  func.func @transform_0(%arg0: i32) -> (i32, i32) {
    %c0_i32 = arith.constant 0 : i32
    %c0_i32_0 = arith.constant 0 : i32
    %c0_i32_1 = arith.constant 0 : i32
    return %c0_i32, %c0_i32_0 : i32, i32
  }
  func.func @transform_1(%arg0: i32) -> (i32, i32) {
    %c0_i32 = arith.constant 0 : i32
    %c0_i32_0 = arith.constant 0 : i32
    %c0_i32_1 = arith.constant 0 : i32
    return %c0_i32, %c0_i32_0 : i32, i32
  }
  func.func @transform_2(%arg0: i32) -> (i32, i32) {
    %c0_i32 = arith.constant 0 : i32
    %c0_i32_0 = arith.constant 0 : i32
    return %arg0, %c0_i32 : i32, i32
  }
  func.func @transform_3(%arg0: i32) -> (i32, i32) {
    %c0_i32 = arith.constant 0 : i32
    %c0_i32_0 = arith.constant 0 : i32
    return %arg0, %c0_i32 : i32, i32
  }
  func.func @transform_4(%arg0: i32) -> (i32, i32) {
    %c0_i32 = arith.constant 0 : i32
    %c0_i32_0 = arith.constant 0 : i32
    return %arg0, %c0_i32 : i32, i32
  }
}

</mosaic_0001>

<llo_original>
// kernel: tpu_custom_call.1
$region0: #{tpu_custom_call.1}
  #allocation0 [shape = 'u32[]', space=smem, size = 0x4, offset = 0x4, fixed_abs, tag = 'smem constant byte address 0x4 - core index']
  #allocation1 [shape = 'u32[144,128]{1,0:T(1,128)}', space=vmem, size = 0x12000, scoped, tag = 'internal scratch']
  #allocation2 [shape = 'f32[1,1]{1,0:T(1,128)S(6)}', space=smem, size = 0x200, scoped, tag = 'scoped memory for tpu_custom_call.1']
  #allocation3 [shape = 'f32[1,1]{1,0:T(1,128)S(6)}', space=smem, size = 0x200, scoped, tag = 'scoped memory for tpu_custom_call.1']
  %s0 = inlined_call_operand.<no memory space> [shape: f32[1,1], index: 0, kind: input, shape index: {}]
  %s1 = inlined_call_operand.<no memory space> [shape: f32[1,1], index: 1, kind: input, shape index: {}]
  %s2 = inlined_call_operand.hbm [shape: f32[16,128], index: 2, kind: input, shape index: {}]
  %s3 = inlined_call_operand.hbm [shape: f32[16,128], index: 3, kind: input, shape index: {}]
  %s4 = inlined_call_operand.hbm [shape: f32[16,128], index: 4, kind: output, shape index: {}]
  %s5 = sld [smem:[#allocation0]]
  $region57: #{tpu_custom_call.1} parent=0
    _
  %s7 = ssub.s32 1, %s5
  %s8 = scalar_select 0, %s7, %s5
  %9 = sst [smem:[#allocation2]] %s0
  %10 = sst [smem:[#allocation3]] %s1
  $region1: #{tpu_custom_call.1} parent=0
    #allocation4 [shape = 'u8[8192]{0}', space=vmem, size = 0x2000, scoped, tag = 'input window, operand 2']
    #allocation5 [shape = 's32[2]{0}', space=sflag, size = 0x8, scoped, tag = 'scoped memory for tpu_custom_call.1']
    #allocation6 [shape = 's32[2]{0}', space=sflag, size = 0x8, scoped, tag = 'scoped memory for tpu_custom_call.1']
    #allocation7 [shape = 'u8[8192]{0}', space=vmem, size = 0x2000, scoped, tag = 'input window, operand 3']
    #allocation8 [shape = 's32[2]{0}', space=sflag, size = 0x8, scoped, tag = 'scoped memory for tpu_custom_call.1']
    #allocation9 [shape = 'u8[8192]{0}', space=vmem, size = 0x2000, scoped, tag = 'output window, operand 0']
    %11 = vsyncpa [#allocation5], 0
    %s12 = scalar_lea.sflag [#allocation5], 1
    %13 = vsyncpa %s12, 0
    %14 = vsyncpa [#allocation8], 0
    %s15 = scalar_lea.sflag [#allocation8], 1
    %16 = vsyncpa %s15, 0
    %17 = vsyncpa [#allocation6], 0
    %s18 = scalar_lea.sflag [#allocation6], 1
    %19 = vsyncpa %s18, 0
    loop: start=0, step=1, limit=4
    $region2: #{tpu_custom_call.1} parent=1 // loop_pre_header
      _
    $region3: #{tpu_custom_call.1} parent=1 // loop_header
      %s21 = sphi 0, %s25
      %p22 = scmp.ge.s32.totalorder %s21, 4
      %s29 = sphi 0, %s29
      %s31 = sphi 0, %s29
      %s32 = sphi 0, %s31
      %s46 = sphi 0, %s32
      %s50 = sphi 0, %s50
      %s52 = sphi 0, %s50
      %s53 = sphi 0, %s52
      %s67 = sphi 0, %s53
      %s73 = sphi 0, %s75
      %s76 = sphi 0, %s73
      %s77 = sphi 0, %s76
      %s93 = sphi 0, %s77
      %s99 = sphi 0, %s101
      %s102 = sphi 0, %s99
      %s103 = sphi 0, %s102
      %s119 = sphi 0, %s103
      %s125 = sphi 0, %s127
      %s128 = sphi 0, %s125
      %s129 = sphi 0, %s128
      %s145 = sphi 0, %s129
    $region4: #{tpu_custom_call.1} parent=1 // loop_header_branch
      %24 = sbr.rel (%p22) target = $region8
    $region5: #{tpu_custom_call.1} parent=1 // loop_body
      %s26 = ssub.s32 %s21, 1
      %s27 = ssub.s32 %s21, 2
      %s28 = sadd.s32 %s21, 1
      %s30 = sadd.s32 %s29, 1
      %p33 = scmp.eq.s32.totalorder %s21, 1
      %p34 = scmp.ne.s32.totalorder %s29, %s31
      %p35 = scmp.eq.s32.totalorder %s21, 0
      %p36 = por %p34, %p35
      %p37 = scmp.ne.s32.totalorder %s29, %s31
      %p38 = scmp.eq.s32.totalorder %s26, 1
      %p39 = por %p37, %p38
      %p40 = scmp.ne.s32.totalorder %s31, %s32
      %p41 = scmp.eq.s32.totalorder %s26, 0
      %p42 = por %p40, %p41
      %p43 = scmp.ne.s32.totalorder %s31, %s32
      %p44 = scmp.eq.s32.totalorder %s27, 1
      %p45 = por %p43, %p44
      %p47 = scmp.ne.s32.totalorder %s32, %s46
      %p48 = scmp.eq.s32.totalorder %s27, 0
      %p49 = por %p47, %p48
      %s51 = sadd.s32 %s50, 1
      %p54 = scmp.eq.s32.totalorder %s21, 1
      %p55 = scmp.ne.s32.totalorder %s50, %s52
      %p56 = scmp.eq.s32.totalorder %s21, 0
      %p57 = por %p55, %p56
      %p58 = scmp.ne.s32.totalorder %s50, %s52
      %p59 = scmp.eq.s32.totalorder %s26, 1
      %p60 = por %p58, %p59
      %p61 = scmp.ne.s32.totalorder %s52, %s53
      %p62 = scmp.eq.s32.totalorder %s26, 0
      %p63 = por %p61, %p62
      %p64 = scmp.ne.s32.totalorder %s52, %s53
      %p65 = scmp.eq.s32.totalorder %s27, 1
      %p66 = por %p64, %p65
      %p68 = scmp.ne.s32.totalorder %s53, %s67
      %p69 = scmp.eq.s32.totalorder %s27, 0
      %p70 = por %p68, %p69
      %s71 = ssub.s32 %s21, %s28
      %p72 = scmp.eq.s32.totalorder %s71, 0
      %s74 = sadd.s32 %s73, 1
      %s75 = scalar_select %p72, %s73, %s74
      %p78 = pneg %p72
      %p79 = scmp.eq.s32.totalorder %s21, 1
      %p80 = por %p78, %p79
      %p81 = scmp.ne.s32.totalorder %s73, %s76
      %p82 = scmp.eq.s32.totalorder %s21, 0
      %p83 = por %p81, %p82
      %p84 = scmp.ne.s32.totalorder %s73, %s76
      %p85 = scmp.eq.s32.totalorder %s26, 1
      %p86 = por %p84, %p85
      %p87 = scmp.ne.s32.totalorder %s76, %s77
      %p88 = scmp.eq.s32.totalorder %s26, 0
      %p89 = por %p87, %p88
      %p90 = scmp.ne.s32.totalorder %s76, %s77
      %p91 = scmp.eq.s32.totalorder %s27, 1
      %p92 = por %p90, %p91
      %p94 = scmp.ne.s32.totalorder %s77, %s93
      %p95 = scmp.eq.s32.totalorder %s27, 0
      %p96 = por %p94, %p95
      %s97 = ssub.s32 %s21, %s28
      %p98 = scmp.eq.s32.totalorder %s97, 0
      %s100 = sadd.s32 %s99, 1
      %s101 = scalar_select %p98, %s99, %s100
      %p104 = pneg %p98
      %p105 = scmp.eq.s32.totalorder %s21, 1
      %p106 = por %p104, %p105
      %p107 = scmp.ne.s32.totalorder %s99, %s102
      %p108 = scmp.eq.s32.totalorder %s21, 0
      %p109 = por %p107, %p108
      %p110 = scmp.ne.s32.totalorder %s99, %s102
      %p111 = scmp.eq.s32.totalorder %s26, 1
      %p112 = por %p110, %p111
      %p113 = scmp.ne.s32.totalorder %s102, %s103
      %p114 = scmp.eq.s32.totalorder %s26, 0
      %p115 = por %p113, %p114
      %p116 = scmp.ne.s32.totalorder %s102, %s103
      %p117 = scmp.eq.s32.totalorder %s27, 1
      %p118 = por %p116, %p117
      %p120 = scmp.ne.s32.totalorder %s103, %s119
      %p121 = scmp.eq.s32.totalorder %s27, 0
      %p122 = por %p120, %p121
      %s123 = ssub.s32 %s21, %s28
      %p124 = scmp.eq.s32.totalorder %s123, 0
      %s126 = sadd.s32 %s125, 1
      %s127 = scalar_select %p124, %s125, %s126
      %p130 = pneg %p124
      %p131 = scmp.eq.s32.totalorder %s21, 1
      %p132 = por %p130, %p131
      %p133 = scmp.ne.s32.totalorder %s125, %s128
      %p134 = scmp.eq.s32.totalorder %s21, 0
      %p135 = por %p133, %p134
      %p136 = scmp.ne.s32.totalorder %s125, %s128
      %p137 = scmp.eq.s32.totalorder %s26, 1
      %p138 = por %p136, %p137
      %p139 = scmp.ne.s32.totalorder %s128, %s129
      %p140 = scmp.eq.s32.totalorder %s26, 0
      %p141 = por %p139, %p140
      %p142 = scmp.ne.s32.totalorder %s128, %s129
      %p143 = scmp.eq.s32.totalorder %s27, 1
      %p144 = por %p142, %p143
      %p146 = scmp.ne.s32.totalorder %s129, %s145
      %p147 = scmp.eq.s32.totalorder %s27, 0
      %p148 = por %p146, %p147
      %p149 = scmp.le.s32.totalorder 1, %s21
      %p150 = scmp.lt.s32.totalorder %s21, 3
      %p151 = pnand %p149, %p150
      %p152 = pneg %p151
      // Predicated region
      $region9: #{tpu_custom_call.1} parent=5 // pred_check
        _
      $region10: #{tpu_custom_call.1} parent=5 // pred_check_branch
        %154 = sbr.rel (%p151) target = $region12
      $region11: #{tpu_custom_call.1} parent=5 // pred_region
        %s155 = ssub.s32 %s21, 1
        // Predicated region
        $region13: #{tpu_custom_call.1} parent=11 // pred_check
          %p156 = pneg %p42
        $region14: #{tpu_custom_call.1} parent=11 // pred_check_branch
          %158 = sbr.rel (%p156) target = $region16
        $region15: #{tpu_custom_call.1} parent=11 // pred_region
          _
        $region16: #{tpu_custom_call.1} parent=11 // pred_fallthru
          _
        // Predicated region
        $region17: #{tpu_custom_call.1} parent=11 // pred_check
          %p159 = pneg %p63
        $region18: #{tpu_custom_call.1} parent=11 // pred_check_branch
          %161 = sbr.rel (%p159) target = $region20
        $region19: #{tpu_custom_call.1} parent=11 // pred_region
          _
        $region20: #{tpu_custom_call.1} parent=11 // pred_fallthru
          _
      $region12: #{tpu_custom_call.1} parent=5 // pred_fallthru
        _
      %p162 = scmp.lt.s32.totalorder %s21, 2
      // Predicated region
      $region21: #{tpu_custom_call.1} parent=5 // pred_check
        %p163 = pneg %p162
      $region22: #{tpu_custom_call.1} parent=5 // pred_check_branch
        %165 = sbr.rel (%p163) target = $region24
      $region23: #{tpu_custom_call.1} parent=5 // pred_region
        // Predicated region
        $region25: #{tpu_custom_call.1} parent=23 // pred_check
          %p166 = pneg %p83
        $region26: #{tpu_custom_call.1} parent=23 // pred_check_branch
          %168 = sbr.rel (%p166) target = $region28
        $region27: #{tpu_custom_call.1} parent=23 // pred_region
          %s169 = sand.u32 %s73, 1
          %s170 = scalar_lea.sflag [#allocation5], %s169
          %s171 = sand.u32 %s73, 1
          %s172 = smul.addr %s171, 8
          %s173 = scalar_lea.vmem [#allocation4], %s172
          %s175 = ssub.s32 128, 128
          %176 = vsyncadd %s170, %s175
          %s177 = smul.addr %s21, 128
          %s178 = scalar_lea.hbm %s2, %s177
          %s180 = sshll.u32 %s173, 4
          %s181 = int_to_ptr.vmem [resolvable:$true] %s180
          %183 = dma.hbm_to_vmem [thread:$0]  %s178, 128, %s181, %s170
        $region28: #{tpu_custom_call.1} parent=23 // pred_fallthru
          _
        // Predicated region
        $region29: #{tpu_custom_call.1} parent=23 // pred_check
          %p184 = pneg %p109
        $region30: #{tpu_custom_call.1} parent=23 // pred_check_branch
          %186 = sbr.rel (%p184) target = $region32
        $region31: #{tpu_custom_call.1} parent=23 // pred_region
          %s187 = sand.u32 %s99, 1
          %s188 = scalar_lea.sflag [#allocation8], %s187
          %s189 = sand.u32 %s99, 1
          %s190 = smul.addr %s189, 8
          %s191 = scalar_lea.vmem [#allocation7], %s190
          %s193 = ssub.s32 128, 128
          %194 = vsyncadd %s188, %s193
          %s195 = smul.addr %s21, 128
          %s196 = scalar_lea.hbm %s3, %s195
          %s198 = sshll.u32 %s191, 4
          %s199 = int_to_ptr.vmem [resolvable:$true] %s198
          %201 = dma.hbm_to_vmem [thread:$0]  %s196, 128, %s199, %s188
        $region32: #{tpu_custom_call.1} parent=23 // pred_fallthru
          _
      $region24: #{tpu_custom_call.1} parent=5 // pred_fallthru
        _
      %p202 = scmp.le.s32.totalorder 1, %s21
      %p203 = scmp.lt.s32.totalorder %s21, 3
      %p204 = pnand %p202, %p203
      %p205 = pneg %p204
      // Predicated region
      $region33: #{tpu_custom_call.1} parent=5 // pred_check
        _
      $region34: #{tpu_custom_call.1} parent=5 // pred_check_branch
        %207 = sbr.rel (%p204) target = $region36
      $region35: #{tpu_custom_call.1} parent=5 // pred_region
        %s208 = ssub.s32 %s21, 1
        %s209 = sand.u32 %s76, 1
        %s210 = scalar_lea.sflag [#allocation5], %s209
        %s211 = sand.u32 %s76, 1
        %s212 = smul.addr %s211, 8
        %s213 = scalar_lea.vmem [#allocation4], %s212
        // Predicated region
        $region37: #{tpu_custom_call.1} parent=35 // pred_check
          %p214 = pneg %p89
        $region38: #{tpu_custom_call.1} parent=35 // pred_check_branch
          %216 = sbr.rel (%p214) target = $region40
        $region39: #{tpu_custom_call.1} parent=35 // pred_region
          %217 = dma.done %s210, 128
        $region40: #{tpu_custom_call.1} parent=35 // pred_fallthru
          _
        %s218 = sand.u32 %s102, 1
        %s219 = scalar_lea.sflag [#allocation8], %s218
        %s220 = sand.u32 %s102, 1
        %s221 = smul.addr %s220, 8
        %s222 = scalar_lea.vmem [#allocation7], %s221
        // Predicated region
        $region41: #{tpu_custom_call.1} parent=35 // pred_check
          %p223 = pneg %p115
        $region42: #{tpu_custom_call.1} parent=35 // pred_check_branch
          %225 = sbr.rel (%p223) target = $region44
        $region43: #{tpu_custom_call.1} parent=35 // pred_region
          %226 = dma.done %s219, 128
        $region44: #{tpu_custom_call.1} parent=35 // pred_fallthru
          _
        %p227 = pneg %p42
        %p228 = pneg %p39
        %p229 = pneg %p63
        %p230 = pneg %p60
        %s231 = sand.u32 %s76, 1
        %s232 = scalar_lea.sflag [#allocation5], %s231
        %s233 = sand.u32 %s76, 1
        %s234 = smul.addr %s233, 8
        %s235 = scalar_lea.vmem [#allocation4], %s234
        %p236 = pneg %p89
        %p237 = pneg %p86
        %s238 = sand.u32 %s102, 1
        %s239 = scalar_lea.sflag [#allocation8], %s238
        %s240 = sand.u32 %s102, 1
        %s241 = smul.addr %s240, 8
        %s242 = scalar_lea.vmem [#allocation7], %s241
        %p243 = pneg %p115
        %p244 = pneg %p112
        %p245 = pneg %p141
        %p246 = pneg %p138
        %s247 = sand.u32 %s128, 1
        %s248 = scalar_lea.sflag [#allocation6], %s247
        %s249 = sand.u32 %s128, 1
        %s250 = smul.addr %s249, 8
        %s251 = scalar_lea.vmem [#allocation9], %s250
        %s252 = sld [smem:[#allocation2]]
        %s253 = sld [smem:[#allocation3]]
        %v254 = vld [vmem:[%s213] sm:$0xff]
        %v255 = vld [vmem:[%s222] sm:$0xff]
        %v256 = vstv %s252
        %v257 = vmul.f32 %v254, %v256
        %v258 = vstv %s253
        %v259 = vmul.f32 %v255, %v258
        %v260 = vadd.f32 %v257, %v259
        %261 = vst [vmem:[%s251] sm:$0xff] %v260
        %s262 = sand.u32 %s128, 1
        %s263 = scalar_lea.sflag [#allocation6], %s262
        %s264 = sand.u32 %s128, 1
        %s265 = smul.addr %s264, 8
        %s266 = scalar_lea.vmem [#allocation9], %s265
        // Predicated region
        $region45: #{tpu_custom_call.1} parent=35 // pred_check
          %p267 = pneg %p138
        $region46: #{tpu_custom_call.1} parent=35 // pred_check_branch
          %269 = sbr.rel (%p267) target = $region48
        $region47: #{tpu_custom_call.1} parent=35 // pred_region
          %s271 = ssub.s32 128, 128
          %272 = vsyncadd %s263, %s271
          %s273 = smul.addr %s26, 128
          %s274 = scalar_lea.hbm %s4, %s273
          %s276 = sshll.u32 %s266, 4
          %s277 = int_to_ptr.vmem [resolvable:$true] %s276
          %279 = dma.vmem_to_hbm [thread:$0]  %s277, 128, %s274, %s263
        $region48: #{tpu_custom_call.1} parent=35 // pred_fallthru
          _
      $region36: #{tpu_custom_call.1} parent=5 // pred_fallthru
        _
      %p280 = scmp.le.s32.totalorder 2, %s21
      // Predicated region
      $region49: #{tpu_custom_call.1} parent=5 // pred_check
        %p281 = pneg %p280
      $region50: #{tpu_custom_call.1} parent=5 // pred_check_branch
        %283 = sbr.rel (%p281) target = $region52
      $region51: #{tpu_custom_call.1} parent=5 // pred_region
        %s284 = ssub.s32 %s21, 2
        // Predicated region
        $region53: #{tpu_custom_call.1} parent=51 // pred_check
          %p285 = pneg %p144
        $region54: #{tpu_custom_call.1} parent=51 // pred_check_branch
          %287 = sbr.rel (%p285) target = $region56
        $region55: #{tpu_custom_call.1} parent=51 // pred_region
          %s288 = sand.u32 %s129, 1
          %s289 = scalar_lea.sflag [#allocation6], %s288
          %s290 = sand.u32 %s129, 1
          %s291 = smul.addr %s290, 8
          %s292 = scalar_lea.vmem [#allocation9], %s291
          %293 = dma.done %s289, 128
        $region56: #{tpu_custom_call.1} parent=51 // pred_fallthru
          _
      $region52: #{tpu_custom_call.1} parent=5 // pred_fallthru
        _
    $region6: #{tpu_custom_call.1} parent=1 // loop_footer
      %s25 = sadd.s32 1, %s21
    $region7: #{tpu_custom_call.1} parent=1 // loop_footer_branch
      %20 = sbr.rel target = $region3
    $region8: #{tpu_custom_call.1} parent=1 // loop_exit
      _
    %294 = vsyncpa [#allocation5], 1
    %s295 = scalar_lea.sflag [#allocation5], 1
    %296 = vsyncpa %s295, 1
    %297 = vsyncpa [#allocation8], 1
    %s298 = scalar_lea.sflag [#allocation8], 1
    %299 = vsyncpa %s298, 1
    %300 = vsyncpa [#allocation6], 1
    %s301 = scalar_lea.sflag [#allocation6], 1
    %302 = vsyncpa %s301, 1

</llo_original>
